<compile_context>
chip_gen: v7x
topology: tpu7x:2x2x1
jax: 0.10.0
libtpu: 0.0.40
codegen_flags: <defaults>
</compile_context>

<pallas_src>
import functools

import numpy as np
import jax
import jax.numpy as jnp
from jax.experimental import pallas as pl
from jax.experimental.pallas import tpu as pltpu


# MXU operand dtype: bf16 on v5e/v6e/v7x (the MXU is bf16-native on all three);
# accumulation stays f32.
MXU_DTYPE = jnp.bfloat16


def _round_up(x, m):
    return ((x + m - 1) // m) * m


def _pick_vmem_limit():
    # vmem_limit_bytes is a compiler budget cap.  v5e/v6e have 128 MiB physical
    # VMEM; v7x only 64 MiB.  Err low when the chip cannot be identified.
    try:
        kind = jax.devices()[0].device_kind.lower()
    except Exception:
        return 32 * 1024 * 1024
    if "v7" in kind:
        return 48 * 1024 * 1024
    if "v5" in kind or "v6" in kind:
        return 96 * 1024 * 1024
    return 32 * 1024 * 1024


VMEM_LIMIT_BYTES = _pick_vmem_limit()


# --------------------------------------------------------------------------
# Pallas kernel 1: fused linear   y = [relu](x @ w + b)
#   * single-step variant (whole K fits one block): no accumulator scratch
#   * tiled variant (grid = (M/tm, N/tn, K/tk)): f32 VMEM accumulator with
#     pl.when init/finalize, bias + ReLU + cast only on the final k step
# --------------------------------------------------------------------------
def _linear_kernel_single(x_ref, w_ref, b_ref, o_ref, *, relu):
    y = jnp.dot(x_ref[...], w_ref[...],
                preferred_element_type=jnp.float32) + b_ref[...]
    if relu:
        y = jnp.maximum(y, 0.0)
    o_ref[...] = y.astype(o_ref.dtype)


def _linear_kernel_tiled(x_ref, w_ref, b_ref, o_ref, acc_ref, *, relu, nk):
    k = pl.program_id(2)

    @pl.when(k == 0)
    def _():
        acc_ref[...] = jnp.zeros_like(acc_ref)

    acc_ref[...] += jnp.dot(x_ref[...], w_ref[...],
                            preferred_element_type=jnp.float32)

    @pl.when(k == nk - 1)
    def _():
        y = acc_ref[...] + b_ref[...]
        if relu:
            y = jnp.maximum(y, 0.0)
        o_ref[...] = y.astype(o_ref.dtype)


def _pick_tile_m(M, cap):
    """Pick tm so zero-row padding stays small for skinny / awkward M."""
    Mp8 = _round_up(M, 8)
    if Mp8 <= cap:
        return Mp8
    cands = [t for t in (8, 16, 32, 64, 128, 256, 512, 1024) if t <= cap]
    good = [t for t in cands if _round_up(M, t) - Mp8 <= max(Mp8 // 8, 8)]
    return max(good)  # 8 is always "good", so this never fails


def pallas_linear(x, w, b, relu=False, out_dtype=None, tm=512, tn=512, tk=512):
    M, K = x.shape
    _, N = w.shape
    out_dtype = out_dtype or MXU_DTYPE

    # Cast BEFORE padding so the host-side pad copies move half the bytes.
    x = x.astype(MXU_DTYPE)
    w = w.astype(MXU_DTYPE)
    b = b.astype(jnp.float32).reshape(1, N)

    tm = _pick_tile_m(M, tm)
    tn = min(tn, _round_up(N, 128))
    Mp, Np = _round_up(M, tm), _round_up(N, tn)
    bp = jnp.pad(b, ((0, 0), (0, Np - N)))

    # NOTE(v7x): with large real shapes gm/gn >= 2, so the "parallel" axes feed
    # both TensorCores; at toy sizes a single block simply runs on one core.
    if K <= tk:
        # Single reduction step: K stays un-padded (a block dim equal to the
        # full array dim is exempt from the (8,128) rule).  Avoids e.g. the
        # 27 -> 128 HBM pad of the backbone im2col activation, and needs no
        # accumulator scratch.
        xp = jnp.pad(x, ((0, Mp - M), (0, 0)))
        wp = jnp.pad(w, ((0, 0), (0, Np - N)))
        gm, gn = Mp // tm, Np // tn
        out = pl.pallas_call(
            functools.partial(_linear_kernel_single, relu=relu),
            out_shape=jax.ShapeDtypeStruct((Mp, Np), out_dtype),
            grid=(gm, gn),
            in_specs=[
                pl.BlockSpec((tm, K), lambda i, j: (i, 0)),
                pl.BlockSpec((K, tn), lambda i, j: (0, j)),
                pl.BlockSpec((1, tn), lambda i, j: (0, j)),
            ],
            out_specs=pl.BlockSpec((tm, tn), lambda i, j: (i, j)),
            compiler_params=pltpu.CompilerParams(
                dimension_semantics=("parallel", "parallel"),
                vmem_limit_bytes=VMEM_LIMIT_BYTES),
        )(xp, wp, bp)
    else:
        Kp = _round_up(K, tk)
        xp = jnp.pad(x, ((0, Mp - M), (0, Kp - K)))
        wp = jnp.pad(w, ((0, Kp - K), (0, Np - N)))
        gm, gn, gk = Mp // tm, Np // tn, Kp // tk
        out = pl.pallas_call(
            functools.partial(_linear_kernel_tiled, relu=relu, nk=gk),
            out_shape=jax.ShapeDtypeStruct((Mp, Np), out_dtype),
            grid=(gm, gn, gk),
            in_specs=[
                pl.BlockSpec((tm, tk), lambda i, j, k: (i, k)),
                pl.BlockSpec((tk, tn), lambda i, j, k: (k, j)),
                pl.BlockSpec((1, tn), lambda i, j, k: (0, j)),
            ],
            out_specs=pl.BlockSpec((tm, tn), lambda i, j, k: (i, j)),
            scratch_shapes=[pltpu.VMEM((tm, tn), jnp.float32)],
            compiler_params=pltpu.CompilerParams(
                dimension_semantics=("parallel", "parallel", "arbitrary"),
                vmem_limit_bytes=VMEM_LIMIT_BYTES),
        )(xp, wp, bp)
    return out[:M, :N]


def jnp_linear(x, w, b, relu=False, out_dtype=None, tm=None, tn=None, tk=None):
    out_dtype = out_dtype or MXU_DTYPE
    y = jnp.dot(x.astype(MXU_DTYPE), w.astype(MXU_DTYPE),
                preferred_element_type=jnp.float32) + b.astype(jnp.float32)
    if relu:
        y = jnp.maximum(y, 0.0)
    return y.astype(out_dtype)


# --------------------------------------------------------------------------
# Pallas kernel 2: batched per-frame masked max-pool + fc_activities
#   Each grid step handles TB frames: masked pool over the first n valid box
#   slots (mask built in-kernel from a broadcasted iota and the per-frame n),
#   then one (TB, NFB) @ (NFB, ACT_pad) matmul.  Output is 128-lane padded f32.
# --------------------------------------------------------------------------
def _pool_activity_kernel(x_ref, n_ref, w_ref, b_ref, o_ref):
    x = x_ref[...]                                            # (TB, MAX_N, NFB) bf16
    n = n_ref[...]                                            # (TB, 1) int32
    slot = jax.lax.broadcasted_iota(jnp.int32, x.shape, 1)    # box-slot index
    mask = slot < n[:, :, None]                               # (TB, MAX_N, NFB)
    masked = jnp.where(mask, x, jnp.full_like(x, -1e30))
    pooled = jnp.max(masked, axis=1)                          # (TB, NFB)
    # frames with zero valid boxes pool to 0, not -1e30 (keeps logits finite)
    pooled = jnp.where(n > 0, pooled, jnp.zeros_like(pooled))
    acty = jnp.dot(pooled, w_ref[...],
                   preferred_element_type=jnp.float32) + b_ref[...]
    o_ref[...] = acty


def pallas_pool_activities(feats, bboxes_num, wy, by, tb=128):
    BT, MAX_N, NFB = feats.shape
    ACT = wy.shape[1]
    TB = min(tb, _round_up(BT, 8))
    BTp = _round_up(BT, TB)
    ACTp = _round_up(ACT, 128)                                # lane-dense output

    fp = jnp.pad(feats.astype(MXU_DTYPE), ((0, BTp - BT), (0, 0), (0, 0)))
    nums = jnp.pad(bboxes_num.astype(jnp.int32), (0, BTp - BT)).reshape(BTp, 1)
    wyp = jnp.pad(wy.astype(MXU_DTYPE), ((0, 0), (0, ACTp - ACT)))
    byp = jnp.pad(by.astype(jnp.float32).reshape(1, ACT), ((0, 0), (0, ACTp - ACT)))

    out = pl.pallas_call(
        _pool_activity_kernel,
        out_shape=jax.ShapeDtypeStruct((BTp, ACTp), jnp.float32),
        grid=(BTp // TB,),
        in_specs=[
            pl.BlockSpec((TB, MAX_N, NFB), lambda i: (i, 0, 0)),
            pl.BlockSpec((TB, 1), lambda i: (i, 0)),
            pl.BlockSpec((NFB, ACTp), lambda i: (0, 0)),
            pl.BlockSpec((1, ACTp), lambda i: (0, 0)),
        ],
        out_specs=pl.BlockSpec((TB, ACTp), lambda i: (i, 0)),
        compiler_params=pltpu.CompilerParams(
            dimension_semantics=("parallel",),
            vmem_limit_bytes=VMEM_LIMIT_BYTES),
    )(fp, nums, wyp, byp)
    return out[:BT, :ACT]


def jnp_pool_activities(feats, bboxes_num, wy, by):
    feats = feats.astype(MXU_DTYPE)
    n = bboxes_num.reshape(-1, 1)
    mask = jnp.arange(feats.shape[1])[None, :, None] < n[:, :, None]
    pooled = jnp.max(jnp.where(mask, feats, jnp.full_like(feats, -1e30)), axis=1)
    pooled = jnp.where(n > 0, pooled, jnp.zeros_like(pooled))
    return (jnp.dot(pooled, wy.astype(MXU_DTYPE),
                    preferred_element_type=jnp.float32)
            + by.astype(jnp.float32))


# --------------------------------------------------------------------------
# JAX glue: RoIAlign (crop_and_resize, align_corners-style bilinear sampling)
# --------------------------------------------------------------------------
def roi_align_crop_resize(feats_nchw, boxes, box_idx, K):
    # feats_nchw: (NI, D, FH, FW); boxes: (R, 4) [x1, y1, x2, y2] in feature coords
    NI, D, FH, FW = feats_nchw.shape
    feats = jnp.transpose(feats_nchw, (0, 2, 3, 1))            # (NI, FH, FW, D)
    x1, y1, x2, y2 = boxes[:, 0], boxes[:, 1], boxes[:, 2], boxes[:, 3]
    t = jnp.linspace(0.0, 1.0, K)
    ys = jnp.clip(y1[:, None] + (y2 - y1)[:, None] * t[None, :], 0.0, FH - 1.0)
    xs = jnp.clip(x1[:, None] + (x2 - x1)[:, None] * t[None, :], 0.0, FW - 1.0)
    y0f, x0f = jnp.floor(ys), jnp.floor(xs)
    y0, x0 = y0f.astype(jnp.int32), x0f.astype(jnp.int32)
    y1i = jnp.clip(y0 + 1, 0, FH - 1)
    x1i = jnp.clip(x0 + 1, 0, FW - 1)
    wy, wx = ys - y0f, xs - x0f                                 # (R, K)

    def g(yi, xi):  # -> (R, K, K, D)
        return feats[box_idx[:, None, None], yi[:, :, None], xi[:, None, :], :]

    g00, g01 = g(y0, x0), g(y0, x1i)
    g10, g11 = g(y1i, x0), g(y1i, x1i)
    wy_ = wy[:, :, None, None]
    wx_ = wx[:, None, :, None]
    out = (g00 * (1 - wy_) * (1 - wx_) + g01 * (1 - wy_) * wx_ +
           g10 * wy_ * (1 - wx_) + g11 * wy_ * wx_)             # (R, K, K, D)
    return jnp.transpose(out, (0, 3, 1, 2))                     # (R, D, K, K)


# --------------------------------------------------------------------------
# Backbone stand-in: single 3x3 strided conv via im2col + Pallas matmul.
# im2col runs in bf16 (halves the 9x patch blow-up); K = C*3*3 = 27 stays
# un-padded inside pallas_linear (full-K block).
# --------------------------------------------------------------------------
def backbone_standin(images_flat, w_conv, b_conv, OH, OW, linear_fn):
    BT, C, H, W = images_flat.shape
    sh, sw = H // OH, W // OW
    patches = jax.lax.conv_general_dilated_patches(
        images_flat.astype(MXU_DTYPE), filter_shape=(3, 3), window_strides=(sh, sw),
        padding="SAME", dimension_numbers=("NCHW", "OIHW", "NCHW"))
    P = patches.shape[1]                                        # C*3*3
    x = jnp.transpose(patches, (0, 2, 3, 1)).reshape(BT * OH * OW, P)
    y = linear_fn(x, w_conv, b_conv, relu=True)                 # (BT*OH*OW, D) bf16
    D = w_conv.shape[1]
    return jnp.transpose(y.reshape(BT, OH, OW, D), (0, 3, 1, 2))


# --------------------------------------------------------------------------
# Full forward (mirrors Basenet_collective.forward)
# --------------------------------------------------------------------------
def forward(params, images_in, boxes_in, bboxes_num_in, cfg, use_pallas=True):
    linear_fn = pallas_linear if use_pallas else jnp_linear
    pool_fn = pallas_pool_activities if use_pallas else jnp_pool_activities

    B, T = images_in.shape[0], images_in.shape[1]
    H, W = cfg["image_size"]
    OH, OW = cfg["out_size"]
    MAX_N = cfg["num_boxes"]
    NFB = cfg["num_features_boxes"]
    D = cfg["emb_features"]
    K = cfg["crop_size"][0]
    A = cfg["num_actions"]

    BT = B * T
    images_in_flat = images_in.reshape(BT, 3, H, W)
    boxes = boxes_in.reshape(BT, MAX_N, 4)

    # prep_images: scale to [-1, 1]
    images_in_flat = (images_in_flat / 255.0 - 0.5) * 2.0

    # backbone (stand-in) -> (B*T, D, OH, OW); single scale already at (OH, OW)
    # so the interpolate + concat branch of the original forward is an identity.
    feats_multiscale = backbone_standin(
        images_in_flat, params["w_conv"], params["b_conv"], OH, OW, linear_fn)

    # RoIAlign over all boxes
    boxes_in_flat = boxes.reshape(BT * MAX_N, 4)
    boxes_idx_flat = jnp.repeat(jnp.arange(BT, dtype=jnp.int32), MAX_N)
    boxes_feat = roi_align_crop_resize(feats_multiscale, boxes_in_flat,
                                       boxes_idx_flat, K)        # (R, D, K, K)
    boxes_feat = boxes_feat.reshape(BT * MAX_N, D * K * K)

    # fc_emb_1 + ReLU (dropout is identity at eval); bf16 output feeds the
    # fc_actions matmul and the pool kernel.
    emb = linear_fn(boxes_feat, params["w_emb"], params["b_emb"], relu=True)

    # fc_actions: one big lane-dense matmul over all box slots (valid rows are
    # selected host-side, matching the torch.cat(actions_scores) loop order).
    actions_flat = linear_fn(emb, params["w_act"], params["b_act"],
                             relu=False, out_dtype=jnp.float32)
    actions_all = actions_flat.reshape(BT, MAX_N, A)

    # masked max-pool over the first N valid boxes + fc_activities (per frame)
    emb3 = emb.reshape(BT, MAX_N, NFB)
    activities = pool_fn(emb3, bboxes_num_in.reshape(BT).astype(jnp.int32),
                         params["w_acty"], params["b_acty"])
    return actions_all, activities


# --------------------------------------------------------------------------
# Deterministic parameter init (kaiming-normal weights, as in the module)
# --------------------------------------------------------------------------
def kaiming(key, shape):
    fan_in = shape[0]
    return jax.random.normal(key, shape, jnp.float32) * np.sqrt(2.0 / fan_in)


def uniform_bias(key, n, fan_in):
    bound = 1.0 / np.sqrt(fan_in)
    return jax.random.uniform(key, (n,), jnp.float32, -bound, bound)


if __name__ == "__main__":
    cfg = dict(
        image_size=(16, 16), out_size=(8, 8), emb_features=32,
        crop_size=(2, 2), num_features_boxes=32,
        num_features_relation=32, num_features_gcn=32,
        num_boxes=4, num_actions=8, num_activities=8,
        train_dropout_prob=0.3,
    )
    B, T = 2, 1
    H, W = cfg["image_size"]
    OH, OW = cfg["out_size"]
    MAX_N = cfg["num_boxes"]
    D = cfg["emb_features"]
    K = cfg["crop_size"][0]
    NFB = cfg["num_features_boxes"]
    A, ACT = cfg["num_actions"], cfg["num_activities"]

    keys = jax.random.split(jax.random.PRNGKey(0), 16)
    P = 3 * 3 * 3
    params = {
        "w_conv": kaiming(keys[0], (P, D)),
        "b_conv": uniform_bias(keys[1], D, P),
        "w_emb": kaiming(keys[2], (K * K * D, NFB)),
        "b_emb": uniform_bias(keys[3], NFB, K * K * D),
        "w_act": kaiming(keys[4], (NFB, A)),
        "b_act": uniform_bias(keys[5], A, NFB),
        "w_acty": kaiming(keys[6], (NFB, ACT)),
        "b_acty": uniform_bias(keys[7], ACT, NFB),
    }

    # inputs (boxes are in feature-map coordinates, as in the collective dataset)
    images_in = jax.random.uniform(keys[8], (B, T, 3, H, W), jnp.float32) * 255.0
    xy1 = jax.random.uniform(keys[9], (B, T, MAX_N, 2), jnp.float32) * (OW / 2.0)
    wh = 1.0 + jax.random.uniform(keys[10], (B, T, MAX_N, 2), jnp.float32) * (OW / 2.0 - 1.0)
    boxes_in = jnp.concatenate([xy1, xy1 + wh], axis=-1)         # x1, y1, x2, y2
    bboxes_num_in = jnp.array([[3], [4]], dtype=jnp.int32)       # (B, T)

    actions_all, activities_scores = forward(params, images_in, boxes_in,
                                             bboxes_num_in, cfg, use_pallas=True)
    jax.block_until_ready((actions_all, activities_scores))

    # data-dependent concat of the first N valid boxes per frame (host-side),
    # reproducing the torch.cat(actions_scores, dim=0) loop order.
    nums = np.asarray(bboxes_num_in).reshape(-1)
    rows = np.concatenate([bt * MAX_N + np.arange(int(n)) for bt, n in enumerate(nums)])
    actions_scores = np.asarray(actions_all).reshape(B * T * MAX_N, A)[rows]

    assert actions_scores.shape == (int(nums.sum()), A)
    assert activities_scores.shape == (B * T, ACT)

    # sanity check against a pure-JAX reference of the same (bf16-operand) math
    ref_actions_all, ref_activities = forward(params, images_in, boxes_in,
                                              bboxes_num_in, cfg, use_pallas=False)
    np.testing.assert_allclose(np.asarray(actions_all, dtype=np.float32),
                               np.asarray(ref_actions_all, dtype=np.float32),
                               rtol=5e-2, atol=5e-2)
    np.testing.assert_allclose(np.asarray(activities_scores), np.asarray(ref_activities),
                               rtol=5e-2, atol=5e-2)

    # also exercise the tiled multi-k-step matmul path (fc_emb_1 uses it at
    # production K = crop*crop*D sizes) to make sure it compiles + matches.
    kx = jax.random.normal(keys[11], (48, 600), jnp.float32)
    kw = kaiming(keys[12], (600, 40))
    kb = uniform_bias(keys[13], 40, 600)
    y_pl = pallas_linear(kx, kw, kb, relu=True, out_dtype=jnp.float32, tk=256)
    jax.block_until_ready(y_pl)
    y_ref = jnp_linear(kx, kw, kb, relu=True, out_dtype=jnp.float32)
    np.testing.assert_allclose(np.asarray(y_pl), np.asarray(y_ref),
                               rtol=5e-2, atol=5e-2)

    print("KERNEL_OK")
</pallas_src>

<mosaic_0001>
module attributes {stable_mosaic.version = 11 : i64} {
  func.func @_linear_kernel_single(%arg0: i32, %arg1: i32, %arg2: memref<128x27xbf16, #tpu.memory_space<vmem>>, %arg3: memref<27x128xbf16, #tpu.memory_space<vmem>>, %arg4: memref<1x128xf32, #tpu.memory_space<vmem>>, %arg5: memref<128x128xbf16, #tpu.memory_space<vmem>>) attributes {dimension_semantics = [#tpu.dimension_semantics<parallel>, #tpu.dimension_semantics<parallel>], iteration_bounds = array<i64: 1, 1>, scalar_prefetch = 0 : i64, scratch_operands = 0 : i64, tpu.core_type = #tpu.core_type<tc>, window_params = [{transform_indices = @transform_0, window_bounds = array<i64: 128, 27>}, {transform_indices = @transform_1, window_bounds = array<i64: 27, 128>}, {transform_indices = @transform_2, window_bounds = array<i64: 1, 128>}, {transform_indices = @transform_3, window_bounds = array<i64: 128, 128>}]} {
    %c0 = arith.constant 0 : index
    %c0_0 = arith.constant 0 : index
    %0 = vector.load %arg2[%c0, %c0_0] : memref<128x27xbf16, #tpu.memory_space<vmem>>, vector<128x27xbf16>
    %c0_1 = arith.constant 0 : index
    %c0_2 = arith.constant 0 : index
    %1 = vector.load %arg3[%c0_1, %c0_2] : memref<27x128xbf16, #tpu.memory_space<vmem>>, vector<27x128xbf16>
    %cst = arith.constant dense<0.000000e+00> : vector<128x128xf32>
    %2 = tpu.matmul %0, %1, %cst {dimension_numbers = #tpu.dot_dimension_numbers<[1], [0], [0], [1], [0, 0, 1, 1], [], []>} : vector<128x27xbf16>, vector<27x128xbf16>, vector<128x128xf32> -> vector<128x128xf32>
    %c0_3 = arith.constant 0 : index
    %c0_4 = arith.constant 0 : index
    %3 = vector.load %arg4[%c0_3, %c0_4] : memref<1x128xf32, #tpu.memory_space<vmem>>, vector<1x128xf32>
    %4 = vector.broadcast %3 : vector<1x128xf32> to vector<128x128xf32>
    %5 = arith.addf %2, %4 : vector<128x128xf32>
    %cst_5 = arith.constant 0.000000e+00 : f32
    %6 = vector.broadcast %cst_5 : f32 to vector<128x128xf32>
    %7 = arith.maximumf %5, %6 : vector<128x128xf32>
    %8 = arith.truncf %7 : vector<128x128xf32> to vector<128x128xbf16>
    %c0_6 = arith.constant 0 : index
    %c0_7 = arith.constant 0 : index
    %9 = vector.load %arg5[%c0_6, %c0_7] : memref<128x128xbf16, #tpu.memory_space<vmem>>, vector<128x128xbf16>
    tpu.vector_store %arg5[%c0_6, %c0_7], %8 {strides = array<i32>} : memref<128x128xbf16, #tpu.memory_space<vmem>>, vector<128x128xbf16>,
    return
  }
  func.func @transform_0(%arg0: i32, %arg1: i32) -> (i32, i32) {
    %c0_i32 = arith.constant 0 : i32
    %c0_i32_0 = arith.constant 0 : i32
    return %arg0, %c0_i32 : i32, i32
  }
  func.func @transform_1(%arg0: i32, %arg1: i32) -> (i32, i32) {
    %c0_i32 = arith.constant 0 : i32
    %c0_i32_0 = arith.constant 0 : i32
    return %c0_i32, %arg1 : i32, i32
  }
  func.func @transform_2(%arg0: i32, %arg1: i32) -> (i32, i32) {
    %c0_i32 = arith.constant 0 : i32
    %c0_i32_0 = arith.constant 0 : i32
    return %c0_i32, %arg1 : i32, i32
  }
  func.func @transform_3(%arg0: i32, %arg1: i32) -> (i32, i32) {
    %c0_i32 = arith.constant 0 : i32
    return %arg0, %arg1 : i32, i32
  }
}

</mosaic_0001>

<llo_original>
// kernel: tpu_custom_call.1
$region0: #{tpu_custom_call.1}
  #allocation0 [shape = 'u32[]', space=smem, size = 0x4, offset = 0x4, fixed_abs, tag = 'smem constant byte address 0x4 - core index']
  #allocation1 [shape = 'u32[144,128]{1,0:T(1,128)}', space=vmem, size = 0x12000, scoped, tag = 'internal scratch']
  %s0 = inlined_call_operand.vmem [shape: bf16[128,27], index: 0, kind: input, shape index: {}]
  %s1 = inlined_call_operand.vmem [shape: bf16[27,128], index: 1, kind: input, shape index: {}]
  %s2 = inlined_call_operand.vmem [shape: f32[1,128], index: 2, kind: input, shape index: {}]
  %s3 = inlined_call_operand.hbm [shape: bf16[128,128], index: 3, kind: output, shape index: {}]
  %s4 = sld [smem:[#allocation0]]
  $region22: #{tpu_custom_call.1} parent=0
    _
  %s6 = ssub.s32 1, %s4
  %s7 = scalar_select 0, %s6, %s4
  $region1: #{tpu_custom_call.1} parent=0
    #allocation2 [shape = 'u8[32768]{0}', space=vmem, size = 0x8000, scoped, tag = 'output window, operand 0, single buffered']
    #allocation3 [shape = 's32[1]{0}', space=sflag, size = 0x4, scoped, tag = 'scoped memory for tpu_custom_call.1']
    %8 = vsyncpa [#allocation3], 0
    // Predicated region
    $region2: #{tpu_custom_call.1} parent=1 // pred_check
      _
    $region3: #{tpu_custom_call.1} parent=1 // pred_check_branch
      %10 = sbr.rel (0) target = $region5
    $region4: #{tpu_custom_call.1} parent=1 // pred_region
      _
    $region5: #{tpu_custom_call.1} parent=1 // pred_fallthru
      _
    // Predicated region
    $region6: #{tpu_custom_call.1} parent=1 // pred_check
      _
    $region7: #{tpu_custom_call.1} parent=1 // pred_check_branch
      %12 = sbr.rel (0) target = $region9
    $region8: #{tpu_custom_call.1} parent=1 // pred_region
      _
    $region9: #{tpu_custom_call.1} parent=1 // pred_fallthru
      _
    // Predicated region
    $region10: #{tpu_custom_call.1} parent=1 // pred_check
      _
    $region11: #{tpu_custom_call.1} parent=1 // pred_check_branch
      %14 = sbr.rel (0) target = $region13
    $region12: #{tpu_custom_call.1} parent=1 // pred_region
      _
    $region13: #{tpu_custom_call.1} parent=1 // pred_fallthru
      _
    %v16 = vld [vmem:[%s0] sm:$0xf]
    %v17 = vld [vmem:[%s0 + $0x4] sm:$0xf]
    %v18 = vld [vmem:[%s0 + $0x8] sm:$0xf]
    %v19 = vld [vmem:[%s0 + $0xc] sm:$0xf]
    %v20 = vld [vmem:[%s0 + $0x10] sm:$0xf]
    %v21 = vld [vmem:[%s0 + $0x14] sm:$0xf]
    %v22 = vld [vmem:[%s0 + $0x18] sm:$0xf]
    %v23 = vld [vmem:[%s0 + $0x1c] sm:$0xf]
    %v24 = vld [vmem:[%s0 + $0x20] sm:$0xf]
    %v25 = vld [vmem:[%s0 + $0x24] sm:$0xf]
    %v26 = vld [vmem:[%s0 + $0x28] sm:$0xf]
    %v27 = vld [vmem:[%s0 + $0x2c] sm:$0xf]
    %v28 = vld [vmem:[%s0 + $0x30] sm:$0xf]
    %v29 = vld [vmem:[%s0 + $0x34] sm:$0xf]
    %v30 = vld [vmem:[%s0 + $0x38] sm:$0xf]
    %v31 = vld [vmem:[%s0 + $0x3c] sm:$0xf]
    %v32 = vld [vmem:[%s1] sm:$0xf]
    %v33 = vld [vmem:[%s1 + $0x4] sm:$0xf]
    %v34 = vld [vmem:[%s1 + $0x8] sm:$0xf]
    %v35 = vld [vmem:[%s1 + $0xc] sm:$0x3]
    %v36 = vld [vmem:[%s2] sm:$0x1]
    %v38 = vlaneseq
    %v39 = vshrl.u32 %v38, 7
    %v40 = vsub.s32 0, %v39
    %v41 = vrot.slane %v36, %v40
    %v59 = vunpack.c.l.b16 %v16
    %v60 = vunpack.c.l.b16 %v17
    %v61 = vunpack.c.l.b16 %v18
    %v62 = vunpack.c.l.b16 %v19
    %v63 = vunpack.c.l.b16 %v20
    %v64 = vunpack.c.l.b16 %v21
    %v65 = vunpack.c.l.b16 %v22
    %v66 = vunpack.c.l.b16 %v23
    %v67 = vunpack.c.l.b16 %v24
    %v68 = vunpack.c.l.b16 %v25
    %v69 = vunpack.c.l.b16 %v26
    %v70 = vunpack.c.l.b16 %v27
    %v71 = vunpack.c.l.b16 %v28
    %v72 = vunpack.c.l.b16 %v29
    %v73 = vunpack.c.l.b16 %v30
    %v74 = vunpack.c.l.b16 %v31
    %v75 = vpack.c.b16 %v60, %v59
    %v76 = vpack.c.b16 %v62, %v61
    %v77 = vpack.c.b16 %v64, %v63
    %v78 = vpack.c.b16 %v66, %v65
    %v79 = vpack.c.b16 %v68, %v67
    %v80 = vpack.c.b16 %v70, %v69
    %v81 = vpack.c.b16 %v72, %v71
    %v82 = vpack.c.b16 %v74, %v73
    %v87 = vunpack.c.l.b16 %v32
    %v88 = vunpack.c.l.b16 %v33
    %v89 = vunpack.c.l.b16 %v34
    %v90 = vunpack.c.l.b16 %v35
    %v91 = vpack.c.b16 %v88, %v87
    %v92 = vpack.c.b16 %v90, %v89
    %vm94 = vcmask 220160
    %v96 = vsel %vm94, %v75, 0
    %v99 = vsel %vm94, %v76, 0
    %v102 = vsel %vm94, %v77, 0
    %v105 = vsel %vm94, %v78, 0
    %v108 = vsel %vm94, %v79, 0
    %v111 = vsel %vm94, %v80, 0
    %v114 = vsel %vm94, %v81, 0
    %v117 = vsel %vm94, %v82, 0
    %vm119 = vcmask 1044480
    %vm120 = vcmask 1045504
    %v121 = vsel %vm119, 4294967295, 65535
    %v122 = vsel %vm120, %v121, 0
    %v124 = vand.u32 %v92, %v122
    %126 = vmatprep.subr.bf16.mxu0 0
    %127 = vmatpush1.bf16.msra.mxu0 %v91
    %128 = vmatprep.subr.bf16.mxu0 0
    %129 = vmatpush1.bf16.msra.mxu0 %v124
    %130 = vmatprep.subr.bf16.mxu0 0
    %131 = vmatpush1.bf16.msra.mxu0 0
    %132 = vmatprep.subr.bf16.mxu0 0
    %133 = vmatpush1.bf16.msra.mxu0 0
    %134 = vmatprep.subr.bf16.mxu0 0
    %135 = vmatpush1.bf16.msra.mxu0 0
    %136 = vmatprep.subr.bf16.mxu0 0
    %137 = vmatpush1.bf16.msra.mxu0 0
    %138 = vmatprep.subr.bf16.mxu0 0
    %139 = vmatpush1.bf16.msra.mxu0 0
    %140 = vmatprep.subr.bf16.mxu0 0
    %141 = vmatpush1.bf16.msra.mxu0 0
    %142 = vmatprep.subr.bf16.mxu0 0
    %143 = vmatpush1.bf16.msra.mxu0 0
    %144 = vmatprep.subr.bf16.mxu0 0
    %145 = vmatpush1.bf16.msra.mxu0 0
    %146 = vmatprep.subr.bf16.mxu0 0
    %147 = vmatpush1.bf16.msra.mxu0 0
    %148 = vmatprep.subr.bf16.mxu0 0
    %149 = vmatpush1.bf16.msra.mxu0 0
    %150 = vmatprep.subr.bf16.mxu0 0
    %151 = vmatpush1.bf16.msra.mxu0 0
    %152 = vmatprep.subr.bf16.mxu0 0
    %153 = vmatpush1.bf16.msra.mxu0 0
    %154 = vmatprep.subr.bf16.mxu0 0
    %155 = vmatpush1.bf16.msra.mxu0 0
    %156 = vmatprep.subr.bf16.mxu0 0
    %157 = vmatpush1.bf16.msra.mxu0 0
    %158 = vmatprep.mubr.bf16.mxu0 0
    %159 = vmatmul.mubr.bf16.gmra.mrb[0].mxu0 %v96
    %v160 = vpop.f32.mrb[0].mxu0
    %v161 = vadd.f32 %v41, %v160
    %v162 = vpop.f32.mrb[0].mxu0
    %v163 = vpop.f32.mrb[0].mxu0
    %v164 = vadd.f32 %v41, %v163
    %v165 = vpop.f32.mrb[0].mxu0
    %166 = vmatprep.mubr.bf16.mxu0 0
    %167 = vmatmul.mubr.bf16.gmra.mrb[0].mxu0 %v99
    %v168 = vpop.f32.mrb[0].mxu0
    %v169 = vadd.f32 %v41, %v168
    %v170 = vpop.f32.mrb[0].mxu0
    %v171 = vpop.f32.mrb[0].mxu0
    %v172 = vadd.f32 %v41, %v171
    %v173 = vpop.f32.mrb[0].mxu0
    %174 = vmatprep.mubr.bf16.mxu0 0
    %175 = vmatmul.mubr.bf16.gmra.mrb[0].mxu0 %v102
    %v176 = vpop.f32.mrb[0].mxu0
    %v177 = vadd.f32 %v41, %v176
    %v178 = vpop.f32.mrb[0].mxu0
    %v179 = vpop.f32.mrb[0].mxu0
    %v180 = vadd.f32 %v41, %v179
    %v181 = vpop.f32.mrb[0].mxu0
    %182 = vmatprep.mubr.bf16.mxu0 0
    %183 = vmatmul.mubr.bf16.gmra.mrb[0].mxu0 %v105
    %v184 = vpop.f32.mrb[0].mxu0
    %v185 = vadd.f32 %v41, %v184
    %v186 = vpop.f32.mrb[0].mxu0
    %v187 = vpop.f32.mrb[0].mxu0
    %v188 = vadd.f32 %v41, %v187
    %v189 = vpop.f32.mrb[0].mxu0
    %190 = vmatprep.mubr.bf16.mxu0 0
    %191 = vmatmul.mubr.bf16.gmra.mrb[0].mxu0 %v108
    %v192 = vpop.f32.mrb[0].mxu0
    %v193 = vadd.f32 %v41, %v192
    %v194 = vpop.f32.mrb[0].mxu0
    %v195 = vpop.f32.mrb[0].mxu0
    %v196 = vadd.f32 %v41, %v195
    %v197 = vpop.f32.mrb[0].mxu0
    %198 = vmatprep.mubr.bf16.mxu0 0
    %199 = vmatmul.mubr.bf16.gmra.mrb[0].mxu0 %v111
    %v200 = vpop.f32.mrb[0].mxu0
    %v201 = vadd.f32 %v41, %v200
    %v202 = vpop.f32.mrb[0].mxu0
    %v203 = vpop.f32.mrb[0].mxu0
    %v204 = vadd.f32 %v41, %v203
    %v205 = vpop.f32.mrb[0].mxu0
    %206 = vmatprep.mubr.bf16.mxu0 0
    %207 = vmatmul.mubr.bf16.gmra.mrb[0].mxu0 %v114
    %v208 = vpop.f32.mrb[0].mxu0
    %v209 = vadd.f32 %v41, %v208
    %v210 = vpop.f32.mrb[0].mxu0
    %v211 = vpop.f32.mrb[0].mxu0
    %v212 = vadd.f32 %v41, %v211
    %v213 = vpop.f32.mrb[0].mxu0
    %214 = vmatprep.mubr.bf16.mxu0 0
    %215 = vmatmul.mubr.bf16.gmra.mrb[0].mxu0 %v117
    %v216 = vpop.f32.mrb[0].mxu0
    %v217 = vadd.f32 %v41, %v216
    %v218 = vpop.f32.mrb[0].mxu0
    %v219 = vpop.f32.mrb[0].mxu0
    %v220 = vadd.f32 %v41, %v219
    %v221 = vpop.f32.mrb[0].mxu0
    %222 = vdwg.mxu0
    %v223 = vmax.f32 %v161, 0.0
    %v224 = vmax.f32 %v164, 0.0
    %v225 = vmax.f32 %v169, 0.0
    %v226 = vmax.f32 %v172, 0.0
    %v227 = vmax.f32 %v177, 0.0
    %v228 = vmax.f32 %v180, 0.0
    %v229 = vmax.f32 %v185, 0.0
    %v230 = vmax.f32 %v188, 0.0
    %v231 = vmax.f32 %v193, 0.0
    %v232 = vmax.f32 %v196, 0.0
    %v233 = vmax.f32 %v201, 0.0
    %v234 = vmax.f32 %v204, 0.0
    %v235 = vmax.f32 %v209, 0.0
    %v236 = vmax.f32 %v212, 0.0
    %v237 = vmax.f32 %v217, 0.0
    %v238 = vmax.f32 %v220, 0.0
    %v239 = vpack.c.bf16 %v224, %v223
    %v240 = vpack.c.bf16 %v226, %v225
    %v241 = vpack.c.bf16 %v228, %v227
    %v242 = vpack.c.bf16 %v230, %v229
    %v243 = vpack.c.bf16 %v232, %v231
    %v244 = vpack.c.bf16 %v234, %v233
    %v245 = vpack.c.bf16 %v236, %v235
    %v246 = vpack.c.bf16 %v238, %v237
    %v255 = vunpack.c.l.b16 %v239
    %v256 = vunpack.c.h.b16 %v239
    %v257 = vunpack.c.l.b16 %v240
    %v258 = vunpack.c.h.b16 %v240
    %v259 = vunpack.c.l.b16 %v241
    %v260 = vunpack.c.h.b16 %v241
    %v261 = vunpack.c.l.b16 %v242
    %v262 = vunpack.c.h.b16 %v242
    %v263 = vunpack.c.l.b16 %v243
    %v264 = vunpack.c.h.b16 %v243
    %v265 = vunpack.c.l.b16 %v244
    %v266 = vunpack.c.h.b16 %v244
    %v267 = vunpack.c.l.b16 %v245
    %v268 = vunpack.c.h.b16 %v245
    %v269 = vunpack.c.l.b16 %v246
    %v270 = vunpack.c.h.b16 %v246
    %v271 = vpack.c.b16 %v255, %v255
    %v272 = vpack.c.b16 %v256, %v256
    %v273 = vpack.c.b16 %v257, %v257
    %v274 = vpack.c.b16 %v258, %v258
    %v275 = vpack.c.b16 %v259, %v259
    %v276 = vpack.c.b16 %v260, %v260
    %v277 = vpack.c.b16 %v261, %v261
    %v278 = vpack.c.b16 %v262, %v262
    %v279 = vpack.c.b16 %v263, %v263
    %v280 = vpack.c.b16 %v264, %v264
    %v281 = vpack.c.b16 %v265, %v265
    %v282 = vpack.c.b16 %v266, %v266
    %v283 = vpack.c.b16 %v267, %v267
    %v284 = vpack.c.b16 %v268, %v268
    %v285 = vpack.c.b16 %v269, %v269
    %v286 = vpack.c.b16 %v270, %v270
    %303 = vst [vmem:[#allocation2] sm:$0xf] %v271
    %304 = vst [vmem:[#allocation2 + $0x4] sm:$0xf] %v272
    %305 = vst [vmem:[#allocation2 + $0x8] sm:$0xf] %v273
    %306 = vst [vmem:[#allocation2 + $0xc] sm:$0xf] %v274
    %307 = vst [vmem:[#allocation2 + $0x10] sm:$0xf] %v275
    %308 = vst [vmem:[#allocation2 + $0x14] sm:$0xf] %v276
    %309 = vst [vmem:[#allocation2 + $0x18] sm:$0xf] %v277
    %310 = vst [vmem:[#allocation2 + $0x1c] sm:$0xf] %v278
    %311 = vst [vmem:[#allocation2 + $0x20] sm:$0xf] %v279
    %312 = vst [vmem:[#allocation2 + $0x24] sm:$0xf] %v280
    %313 = vst [vmem:[#allocation2 + $0x28] sm:$0xf] %v281
    %314 = vst [vmem:[#allocation2 + $0x2c] sm:$0xf] %v282
    %315 = vst [vmem:[#allocation2 + $0x30] sm:$0xf] %v283
    %316 = vst [vmem:[#allocation2 + $0x34] sm:$0xf] %v284
    %317 = vst [vmem:[#allocation2 + $0x38] sm:$0xf] %v285
    %318 = vst [vmem:[#allocation2 + $0x3c] sm:$0xf] %v286
    // Predicated region
    $region14: #{tpu_custom_call.1} parent=1 // pred_check
      _
    $region15: #{tpu_custom_call.1} parent=1 // pred_check_branch
      %320 = sbr.rel (0) target = $region17
    $region16: #{tpu_custom_call.1} parent=1 // pred_region
      %s322 = ssub.s32 1024, 1024
      %323 = vsyncadd [#allocation3], %s322
      %s324 = sshll.u32 [#allocation2], 4
      %s325 = int_to_ptr.vmem [resolvable:$true] %s324
      %330 = dma.vmem_to_hbm [thread:$0]  %s325, 1024, %s3, [#allocation3], 64, 64, 4
    $region17: #{tpu_custom_call.1} parent=1 // pred_fallthru
      _
    // Predicated region
    $region18: #{tpu_custom_call.1} parent=1 // pred_check
      _
    $region19: #{tpu_custom_call.1} parent=1 // pred_check_branch
      %332 = sbr.rel (0) target = $region21
    $region20: #{tpu_custom_call.1} parent=1 // pred_region
      %333 = dma.done [#allocation3], 1024
    $region21: #{tpu_custom_call.1} parent=1 // pred_fallthru
      _
    %334 = vsyncpa [#allocation3], 1

</llo_original>
